<compile_context>
chip_gen: v7x
topology: tpu7x:2x2x1
jax: 0.10.0
libtpu: 0.0.40
codegen_flags: <defaults>
</compile_context>

<pallas_src>
import jax
import jax.numpy as jnp
from jax.experimental import pallas as pl
from jax.experimental.pallas import tpu as pltpu

_INV_255 = 1.0 / 255.0


# --------------------------------------------------------------------------- kernels
def _packed_u8x4_kernel(x_ref, o_ref):
    """Fast path.  x_ref: (s_tile, 128) int32, each word packs 4 consecutive uint8
    channel bytes of one pixel (little-endian).  o_ref: (4, s_tile, 128) float32."""
    v = x_ref[...]
    scale = jnp.float32(_INV_255)
    for ch in range(4):
        # VPU shift + mask extracts byte `ch`; arithmetic shift is fine because the
        # & 0xFF keeps only the low byte (value in [0, 255]).
        byte = (v >> (8 * ch)) & 0xFF
        o_ref[ch, :, :] = byte.astype(jnp.float32) * scale


def _general_kernel(x_ref, o_ref):
    """Fallback path.  x_ref: (hw_tile, C) native dtype.  o_ref: (C, hw_tile) f32."""
    x = x_ref[...].astype(jnp.float32) * jnp.float32(_INV_255)
    # TODO(synk): for sub-f32 inputs, transposing the narrow dtype before widening
    # would shrink the XLU relayout 2-4x; kept the f32 transpose on this fallback
    # path for lowering robustness (only hit for C != 4 / non-uint8 inputs).
    o_ref[...] = jnp.transpose(x, (1, 0))


# --------------------------------------------------------------------- tile selection
def _pick_s_tile(s: int, per_block_cap_bytes: int = 4 << 20) -> int:
    """Rows-of-128-pixels per block for the packed-u32 fast path.

    Dense VMEM per block: s_tile*128*4 (i32 in) + 4*s_tile*128*4 (f32 out)
    = 2560 * s_tile bytes; Pallas double-buffers (x2) on top of this.
    """
    bytes_per_row = (1 + 4) * 128 * 4
    cap = max(8, (per_block_cap_bytes // bytes_per_row) // 8 * 8)
    if s >= 512:
        # Keep >= ~8 grid steps along the spatial axis (v7x megacore sharding,
        # pipelining overlap) for large images.
        cap = min(cap, max(64, (s // 8) // 8 * 8))
    if s <= cap:
        return s                      # full extent: always a legal block shape
    best = 0
    for t in range(8, cap + 1, 8):    # multiple-of-8 sublane tiles
        if s % t == 0:
            best = t
    return best if best else cap      # non-dividing tile: Pallas masks the tail block


def _pick_hw_tile(hw: int, c: int, in_bytes: int, per_block_cap_bytes: int = 4 << 20) -> int:
    """Pixels per block for the general path, using *padded* VMEM sizes.

    Input block (hw_tile, C): minor dim C pads to 128 lanes -> hw_tile*128*in_bytes.
    Output block (C, hw_tile) f32: C pads to 8 sublanes    -> 8*hw_tile*4.
    Pallas double-buffers (x2) on top of this per-block figure.
    """
    padded_row_bytes = 128 * in_bytes + ((c + 7) // 8) * 8 * 4
    cap = max(128, (per_block_cap_bytes // padded_row_bytes) // 128 * 128)
    if hw >= 8 * 128:
        cap = min(cap, max(128, (hw // 4) // 128 * 128))   # keep >= ~4 grid steps
    if hw <= cap:
        return hw                     # small plane: single bounded block is legal
    best = 0
    for t in range(128, cap + 1, 128):
        if hw % t == 0:
            best = t
    return best if best else cap      # non-dividing tile: Pallas masks the tail block


# --------------------------------------------------------------------------- wrappers
def _preprocess_packed_u8x4(img_nhwc: jax.Array) -> jax.Array:
    n, h, w, _ = img_nhwc.shape
    hw = h * w
    s = hw // 128

    # Free reinterpretation: 4 consecutive uint8 channel bytes -> one int32 word.
    packed = jax.lax.bitcast_convert_type(img_nhwc.reshape(n, hw, 4), jnp.int32)
    packed = packed.reshape(n, s, 128)

    s_tile = _pick_s_tile(s)
    grid = (n, pl.cdiv(s, s_tile))

    out = pl.pallas_call(
        _packed_u8x4_kernel,
        out_shape=jax.ShapeDtypeStruct((n, 4, s, 128), jnp.float32),
        grid=grid,
        in_specs=[pl.BlockSpec((None, s_tile, 128), lambda i, j: (i, j, 0))],
        out_specs=pl.BlockSpec((None, 4, s_tile, 128), lambda i, j: (i, 0, j, 0)),
        compiler_params=pltpu.CompilerParams(
            dimension_semantics=("parallel", "parallel"),
        ),
    )(packed)
    return out.reshape(n, 4, h, w)


def _preprocess_general(img_nhwc: jax.Array) -> jax.Array:
    n, h, w, c = img_nhwc.shape
    hw = h * w
    x = img_nhwc.reshape(n, hw, c)                      # free view
    in_bytes = jnp.dtype(img_nhwc.dtype).itemsize
    hw_tile = _pick_hw_tile(hw, c, in_bytes)
    grid = (n, pl.cdiv(hw, hw_tile))

    out = pl.pallas_call(
        _general_kernel,
        out_shape=jax.ShapeDtypeStruct((n, c, hw), jnp.float32),
        grid=grid,
        in_specs=[pl.BlockSpec((None, hw_tile, c), lambda i, j: (i, j, 0))],
        out_specs=pl.BlockSpec((None, c, hw_tile), lambda i, j: (i, 0, j)),
        compiler_params=pltpu.CompilerParams(
            dimension_semantics=("parallel", "parallel"),
        ),
    )(x)
    return out.reshape(n, c, h, w)


def basic_preprocess(img_nhwc: jax.Array) -> jax.Array:
    """img_nhwc: (N, H, W, C) -> (N, C, H, W) float32, values / 255 (== torch forward)."""
    _, h, w, c = img_nhwc.shape
    if img_nhwc.dtype == jnp.uint8 and c == 4 and (h * w) % 128 == 0:
        return _preprocess_packed_u8x4(img_nhwc)
    return _preprocess_general(img_nhwc)


# ------------------------------------------------------------------------------- test
if __name__ == "__main__":
    key = jax.random.PRNGKey(0)
    k0, k1 = jax.random.split(key)

    # Fast path: uint8 NHWC RGBA-style frame, batch=2, 16x16x4.
    img_u8 = jax.random.randint(k0, (2, 16, 16, 4), 0, 256, dtype=jnp.int32).astype(jnp.uint8)
    out_u8 = basic_preprocess(img_u8)
    jax.block_until_ready(out_u8)
    ref_u8 = jnp.transpose(img_u8, (0, 3, 1, 2)).astype(jnp.float32) / 255.0
    assert out_u8.shape == (2, 4, 16, 16) and out_u8.dtype == jnp.float32
    assert jnp.allclose(out_u8, ref_u8, atol=1e-6), "uint8 fast-path mismatch vs reference"

    # General path: float32 NHWC RGB frame, batch=2, 16x16x3.
    img_f32 = jax.random.uniform(k1, (2, 16, 16, 3), dtype=jnp.float32,
                                 minval=0.0, maxval=255.0)
    out_f32 = basic_preprocess(img_f32)
    jax.block_until_ready(out_f32)
    ref_f32 = jnp.transpose(img_f32, (0, 3, 1, 2)) / 255.0
    assert out_f32.shape == (2, 3, 16, 16) and out_f32.dtype == jnp.float32
    assert jnp.allclose(out_f32, ref_f32, atol=1e-6), "general-path mismatch vs reference"

    print("KERNEL_OK")
</pallas_src>

<mosaic_0001>
module attributes {stable_mosaic.version = 11 : i64} {
  func.func @_packed_u8x4_kernel(%arg0: i32, %arg1: i32, %arg2: memref<1x2x128xi32, #tpu.memory_space<vmem>>, %arg3: memref<1x4x2x128xf32, #tpu.memory_space<vmem>>) attributes {dimension_semantics = [#tpu.dimension_semantics<parallel>, #tpu.dimension_semantics<parallel>], iteration_bounds = array<i64: 2, 1>, scalar_prefetch = 0 : i64, scratch_operands = 0 : i64, tpu.core_type = #tpu.core_type<tc>, window_params = [{transform_indices = @transform_0, window_bounds = array<i64: 1, 2, 128>}, {transform_indices = @transform_1, window_bounds = array<i64: 1, 4, 2, 128>}]} {
    %c0 = arith.constant 0 : index
    %c0_0 = arith.constant 0 : index
    %c0_1 = arith.constant 0 : index
    %0 = vector.load %arg2[%c0, %c0_0, %c0_1] : memref<1x2x128xi32, #tpu.memory_space<vmem>>, vector<1x2x128xi32>
    %1 = vector.shape_cast %0 : vector<1x2x128xi32> to vector<2x128xi32>
    %c0_i32 = arith.constant 0 : i32
    %2 = vector.broadcast %c0_i32 : i32 to vector<2x128xi32>
    %3 = arith.shrsi %1, %2 : vector<2x128xi32>
    %c255_i32 = arith.constant 255 : i32
    %4 = vector.broadcast %c255_i32 : i32 to vector<2x128xi32>
    %5 = arith.andi %3, %4 : vector<2x128xi32>
    %6 = arith.sitofp %5 : vector<2x128xi32> to vector<2x128xf32>
    %cst = arith.constant 0.00392156886 : f32
    %7 = vector.broadcast %cst : f32 to vector<2x128xf32>
    %8 = arith.mulf %6, %7 : vector<2x128xf32>
    %c0_2 = arith.constant 0 : index
    %c0_3 = arith.constant 0 : index
    %c0_4 = arith.constant 0 : index
    %c0_5 = arith.constant 0 : index
    %9 = vector.load %arg3[%c0_2, %c0_3, %c0_4, %c0_5] : memref<1x4x2x128xf32, #tpu.memory_space<vmem>>, vector<1x1x2x128xf32>
    %10 = vector.shape_cast %9 : vector<1x1x2x128xf32> to vector<2x128xf32>
    %11 = vector.shape_cast %8 : vector<2x128xf32> to vector<1x1x2x128xf32>
    tpu.vector_store %arg3[%c0_2, %c0_3, %c0_4, %c0_5], %11 {strides = array<i32>} : memref<1x4x2x128xf32, #tpu.memory_space<vmem>>, vector<1x1x2x128xf32>,
    %c8_i32 = arith.constant 8 : i32
    %12 = vector.broadcast %c8_i32 : i32 to vector<2x128xi32>
    %13 = arith.shrsi %1, %12 : vector<2x128xi32>
    %c255_i32_6 = arith.constant 255 : i32
    %14 = vector.broadcast %c255_i32_6 : i32 to vector<2x128xi32>
    %15 = arith.andi %13, %14 : vector<2x128xi32>
    %16 = arith.sitofp %15 : vector<2x128xi32> to vector<2x128xf32>
    %cst_7 = arith.constant 0.00392156886 : f32
    %17 = vector.broadcast %cst_7 : f32 to vector<2x128xf32>
    %18 = arith.mulf %16, %17 : vector<2x128xf32>
    %c0_8 = arith.constant 0 : index
    %c1 = arith.constant 1 : index
    %c0_9 = arith.constant 0 : index
    %c0_10 = arith.constant 0 : index
    %19 = vector.load %arg3[%c0_8, %c1, %c0_9, %c0_10] : memref<1x4x2x128xf32, #tpu.memory_space<vmem>>, vector<1x1x2x128xf32>
    %20 = vector.shape_cast %19 : vector<1x1x2x128xf32> to vector<2x128xf32>
    %21 = vector.shape_cast %18 : vector<2x128xf32> to vector<1x1x2x128xf32>
    tpu.vector_store %arg3[%c0_8, %c1, %c0_9, %c0_10], %21 {strides = array<i32>} : memref<1x4x2x128xf32, #tpu.memory_space<vmem>>, vector<1x1x2x128xf32>,
    %c16_i32 = arith.constant 16 : i32
    %22 = vector.broadcast %c16_i32 : i32 to vector<2x128xi32>
    %23 = arith.shrsi %1, %22 : vector<2x128xi32>
    %c255_i32_11 = arith.constant 255 : i32
    %24 = vector.broadcast %c255_i32_11 : i32 to vector<2x128xi32>
    %25 = arith.andi %23, %24 : vector<2x128xi32>
    %26 = arith.sitofp %25 : vector<2x128xi32> to vector<2x128xf32>
    %cst_12 = arith.constant 0.00392156886 : f32
    %27 = vector.broadcast %cst_12 : f32 to vector<2x128xf32>
    %28 = arith.mulf %26, %27 : vector<2x128xf32>
    %c0_13 = arith.constant 0 : index
    %c2 = arith.constant 2 : index
    %c0_14 = arith.constant 0 : index
    %c0_15 = arith.constant 0 : index
    %29 = vector.load %arg3[%c0_13, %c2, %c0_14, %c0_15] : memref<1x4x2x128xf32, #tpu.memory_space<vmem>>, vector<1x1x2x128xf32>
    %30 = vector.shape_cast %29 : vector<1x1x2x128xf32> to vector<2x128xf32>
    %31 = vector.shape_cast %28 : vector<2x128xf32> to vector<1x1x2x128xf32>
    tpu.vector_store %arg3[%c0_13, %c2, %c0_14, %c0_15], %31 {strides = array<i32>} : memref<1x4x2x128xf32, #tpu.memory_space<vmem>>, vector<1x1x2x128xf32>,
    %c24_i32 = arith.constant 24 : i32
    %32 = vector.broadcast %c24_i32 : i32 to vector<2x128xi32>
    %33 = arith.shrsi %1, %32 : vector<2x128xi32>
    %c255_i32_16 = arith.constant 255 : i32
    %34 = vector.broadcast %c255_i32_16 : i32 to vector<2x128xi32>
    %35 = arith.andi %33, %34 : vector<2x128xi32>
    %36 = arith.sitofp %35 : vector<2x128xi32> to vector<2x128xf32>
    %cst_17 = arith.constant 0.00392156886 : f32
    %37 = vector.broadcast %cst_17 : f32 to vector<2x128xf32>
    %38 = arith.mulf %36, %37 : vector<2x128xf32>
    %c0_18 = arith.constant 0 : index
    %c3 = arith.constant 3 : index
    %c0_19 = arith.constant 0 : index
    %c0_20 = arith.constant 0 : index
    %39 = vector.load %arg3[%c0_18, %c3, %c0_19, %c0_20] : memref<1x4x2x128xf32, #tpu.memory_space<vmem>>, vector<1x1x2x128xf32>
    %40 = vector.shape_cast %39 : vector<1x1x2x128xf32> to vector<2x128xf32>
    %41 = vector.shape_cast %38 : vector<2x128xf32> to vector<1x1x2x128xf32>
    tpu.vector_store %arg3[%c0_18, %c3, %c0_19, %c0_20], %41 {strides = array<i32>} : memref<1x4x2x128xf32, #tpu.memory_space<vmem>>, vector<1x1x2x128xf32>,
    return
  }
  func.func @transform_0(%arg0: i32, %arg1: i32) -> (i32, i32, i32) {
    %c0_i32 = arith.constant 0 : i32
    %c0_i32_0 = arith.constant 0 : i32
    return %arg0, %arg1, %c0_i32 : i32, i32, i32
  }
  func.func @transform_1(%arg0: i32, %arg1: i32) -> (i32, i32, i32, i32) {
    %c0_i32 = arith.constant 0 : i32
    %c0_i32_0 = arith.constant 0 : i32
    %c0_i32_1 = arith.constant 0 : i32
    return %arg0, %c0_i32, %arg1, %c0_i32_0 : i32, i32, i32, i32
  }
}

</mosaic_0001>

<llo_original>
// kernel: tpu_custom_call.1
$region0: #{tpu_custom_call.1}
  #allocation0 [shape = 'u32[]', space=smem, size = 0x4, offset = 0x4, fixed_abs, tag = 'smem constant byte address 0x4 - core index']
  #allocation1 [shape = 'u32[144,128]{1,0:T(1,128)}', space=vmem, size = 0x12000, scoped, tag = 'internal scratch']
  %s0 = inlined_call_operand.hbm [shape: s32[2,2,128], index: 0, kind: input, shape index: {}]
  %s1 = inlined_call_operand.hbm [shape: f32[2,4,2,128], index: 1, kind: output, shape index: {}]
  %s2 = sld [smem:[#allocation0]]
  $region41: #{tpu_custom_call.1} parent=0
    _
  %s4 = ssub.s32 1, %s2
  %s5 = scalar_select 0, %s4, %s2
  $region1: #{tpu_custom_call.1} parent=0
    #allocation2 [shape = 'u8[2048]{0}', space=vmem, size = 0x800, scoped, tag = 'input window, operand 0']
    #allocation3 [shape = 's32[2]{0}', space=sflag, size = 0x8, scoped, tag = 'scoped memory for tpu_custom_call.1']
    #allocation4 [shape = 's32[2]{0}', space=sflag, size = 0x8, scoped, tag = 'scoped memory for tpu_custom_call.1']
    #allocation5 [shape = 'u8[8192]{0}', space=vmem, size = 0x2000, scoped, tag = 'output window, operand 0']
    %6 = vsyncpa [#allocation3], 0
    %s7 = scalar_lea.sflag [#allocation3], 1
    %8 = vsyncpa %s7, 0
    %9 = vsyncpa [#allocation4], 0
    %s10 = scalar_lea.sflag [#allocation4], 1
    %11 = vsyncpa %s10, 0
    loop: start=0, step=1, limit=4
    $region2: #{tpu_custom_call.1} parent=1 // loop_pre_header
      _
    $region3: #{tpu_custom_call.1} parent=1 // loop_header
      %s13 = sphi 0, %s17
      %p14 = scmp.ge.s32.totalorder %s13, 4
      %s20 = sphi 0, %s32
      %s21 = sphi 0, %s28
      %s22 = sphi 0, %s20
      %s23 = sphi 0, %s21
      %s24 = sphi 0, %s22
      %s25 = sphi 0, %s23
      %s37 = sphi 0, %s39
      %s40 = sphi 0, %s37
      %s41 = sphi 0, %s40
      %s57 = sphi 0, %s41
      %s65 = sphi 0, %s67
      %s68 = sphi 0, %s65
      %s69 = sphi 0, %s68
      %s85 = sphi 0, %s69
    $region4: #{tpu_custom_call.1} parent=1 // loop_header_branch
      %16 = sbr.rel (%p14) target = $region8
    $region5: #{tpu_custom_call.1} parent=1 // loop_body
      %s18 = ssub.s32 %s13, 1
      %s19 = ssub.s32 %s13, 2
      %s26 = sadd.s32 1, %s21
      %p27 = scmp.ge.s32.totalorder %s26, 1
      %s28 = scalar_select %p27, 0, %s26
      %s29 = sadd.s32 1, %s20
      %s30 = scalar_select %p27, %s29, %s20
      %p31 = scmp.ge.s32.totalorder %s30, 2
      %s32 = scalar_select %p31, 0, %s30
      %s33 = ssub.s32 %s20, %s32
      %s34 = ssub.s32 %s21, %s28
      %s35 = sor.u32 %s33, %s34
      %p36 = scmp.eq.s32.totalorder %s35, 0
      %s38 = sadd.s32 %s37, 1
      %s39 = scalar_select %p36, %s37, %s38
      %p42 = pneg %p36
      %p43 = scmp.eq.s32.totalorder %s13, 1
      %p44 = por %p42, %p43
      %p45 = scmp.ne.s32.totalorder %s37, %s40
      %p46 = scmp.eq.s32.totalorder %s13, 0
      %p47 = por %p45, %p46
      %p48 = scmp.ne.s32.totalorder %s37, %s40
      %p49 = scmp.eq.s32.totalorder %s18, 1
      %p50 = por %p48, %p49
      %p51 = scmp.ne.s32.totalorder %s40, %s41
      %p52 = scmp.eq.s32.totalorder %s18, 0
      %p53 = por %p51, %p52
      %p54 = scmp.ne.s32.totalorder %s40, %s41
      %p55 = scmp.eq.s32.totalorder %s19, 1
      %p56 = por %p54, %p55
      %p58 = scmp.ne.s32.totalorder %s41, %s57
      %p59 = scmp.eq.s32.totalorder %s19, 0
      %p60 = por %p58, %p59
      %s61 = ssub.s32 %s20, %s32
      %s62 = ssub.s32 %s21, %s28
      %s63 = sor.u32 %s61, %s62
      %p64 = scmp.eq.s32.totalorder %s63, 0
      %s66 = sadd.s32 %s65, 1
      %s67 = scalar_select %p64, %s65, %s66
      %p70 = pneg %p64
      %p71 = scmp.eq.s32.totalorder %s13, 1
      %p72 = por %p70, %p71
      %p73 = scmp.ne.s32.totalorder %s65, %s68
      %p74 = scmp.eq.s32.totalorder %s13, 0
      %p75 = por %p73, %p74
      %p76 = scmp.ne.s32.totalorder %s65, %s68
      %p77 = scmp.eq.s32.totalorder %s18, 1
      %p78 = por %p76, %p77
      %p79 = scmp.ne.s32.totalorder %s68, %s69
      %p80 = scmp.eq.s32.totalorder %s18, 0
      %p81 = por %p79, %p80
      %p82 = scmp.ne.s32.totalorder %s68, %s69
      %p83 = scmp.eq.s32.totalorder %s19, 1
      %p84 = por %p82, %p83
      %p86 = scmp.ne.s32.totalorder %s69, %s85
      %p87 = scmp.eq.s32.totalorder %s19, 0
      %p88 = por %p86, %p87
      %p89 = scmp.le.s32.totalorder 1, %s13
      %p90 = scmp.lt.s32.totalorder %s13, 3
      %p91 = pnand %p89, %p90
      %p92 = pneg %p91
      // Predicated region
      $region9: #{tpu_custom_call.1} parent=5 // pred_check
        _
      $region10: #{tpu_custom_call.1} parent=5 // pred_check_branch
        %94 = sbr.rel (%p91) target = $region12
      $region11: #{tpu_custom_call.1} parent=5 // pred_region
        %s95 = ssub.s32 %s13, 1
      $region12: #{tpu_custom_call.1} parent=5 // pred_fallthru
        _
      %p96 = scmp.lt.s32.totalorder %s13, 2
      // Predicated region
      $region13: #{tpu_custom_call.1} parent=5 // pred_check
        %p97 = pneg %p96
      $region14: #{tpu_custom_call.1} parent=5 // pred_check_branch
        %99 = sbr.rel (%p97) target = $region16
      $region15: #{tpu_custom_call.1} parent=5 // pred_region
        // Predicated region
        $region17: #{tpu_custom_call.1} parent=15 // pred_check
          %p100 = pneg %p47
        $region18: #{tpu_custom_call.1} parent=15 // pred_check_branch
          %102 = sbr.rel (%p100) target = $region20
        $region19: #{tpu_custom_call.1} parent=15 // pred_region
          %s103 = sand.u32 %s37, 1
          %s104 = scalar_lea.sflag [#allocation3], %s103
          %s105 = sand.u32 %s37, 1
          %s106 = smul.addr %s105, 2
          %s107 = scalar_lea.vmem [#allocation2], %s106
          %s109 = ssub.s32 32, 32
          %110 = vsyncadd %s104, %s109
          %s111 = sadd.s32 %s21, %s20
          %s112 = smul.addr %s111, 32
          %s113 = scalar_lea.hbm %s0, %s112
          %s115 = sshll.u32 %s107, 4
          %s116 = int_to_ptr.vmem [resolvable:$true] %s115
          %118 = dma.hbm_to_vmem [thread:$0]  %s113, 32, %s116, %s104
        $region20: #{tpu_custom_call.1} parent=15 // pred_fallthru
          _
      $region16: #{tpu_custom_call.1} parent=5 // pred_fallthru
        _
      %p119 = scmp.le.s32.totalorder 1, %s13
      %p120 = scmp.lt.s32.totalorder %s13, 3
      %p121 = pnand %p119, %p120
      %p122 = pneg %p121
      // Predicated region
      $region21: #{tpu_custom_call.1} parent=5 // pred_check
        _
      $region22: #{tpu_custom_call.1} parent=5 // pred_check_branch
        %124 = sbr.rel (%p121) target = $region24
      $region23: #{tpu_custom_call.1} parent=5 // pred_region
        %s125 = ssub.s32 %s13, 1
        %s126 = sand.u32 %s40, 1
        %s127 = scalar_lea.sflag [#allocation3], %s126
        %s128 = sand.u32 %s40, 1
        %s129 = smul.addr %s128, 2
        %s130 = scalar_lea.vmem [#allocation2], %s129
        // Predicated region
        $region25: #{tpu_custom_call.1} parent=23 // pred_check
          %p131 = pneg %p53
        $region26: #{tpu_custom_call.1} parent=23 // pred_check_branch
          %133 = sbr.rel (%p131) target = $region28
        $region27: #{tpu_custom_call.1} parent=23 // pred_region
          %134 = dma.done %s127, 32
        $region28: #{tpu_custom_call.1} parent=23 // pred_fallthru
          _
        %s135 = sand.u32 %s40, 1
        %s136 = scalar_lea.sflag [#allocation3], %s135
        %s137 = sand.u32 %s40, 1
        %s138 = smul.addr %s137, 2
        %s139 = scalar_lea.vmem [#allocation2], %s138
        %p140 = pneg %p53
        %p141 = pneg %p50
        %p142 = pneg %p81
        %p143 = pneg %p78
        %s144 = sand.u32 %s68, 1
        %s145 = scalar_lea.sflag [#allocation4], %s144
        %s146 = sand.u32 %s68, 1
        %s147 = smul.addr %s146, 8
        %s148 = scalar_lea.vmem [#allocation5], %s147
        %v149 = vld [vmem:[%s130] sm:$0x3]
        %v150 = vand.u32 %v149, 255
        %v151 = vcvt.s32.f32 %v150
        %v152 = vmul.f32 %v151, 0.003921569
        %153 = vst [vmem:[%s148] sm:$0x3] %v152
        %v154 = vshra.s32 %v149, 8
        %v155 = vand.u32 %v154, 255
        %v156 = vcvt.s32.f32 %v155
        %v157 = vmul.f32 %v156, 0.003921569
        %s158 = scalar_lea.vmem %s148, 2 [#allocation5]
        %159 = vst [vmem:[%s158] sm:$0x3] %v157
        %v160 = vshra.s32 %v149, 16
        %v161 = vand.u32 %v160, 255
        %v162 = vcvt.s32.f32 %v161
        %v163 = vmul.f32 %v162, 0.003921569
        %s164 = scalar_lea.vmem %s148, 4 [#allocation5]
        %165 = vst [vmem:[%s164] sm:$0x3] %v163
        %v166 = vshra.s32 %v149, 24
        %v167 = vand.u32 %v166, 255
        %v168 = vcvt.s32.f32 %v167
        %v169 = vmul.f32 %v168, 0.003921569
        %s170 = scalar_lea.vmem %s148, 6 [#allocation5]
        %171 = vst [vmem:[%s170] sm:$0x3] %v169
        %s172 = sand.u32 %s68, 1
        %s173 = scalar_lea.sflag [#allocation4], %s172
        %s174 = sand.u32 %s68, 1
        %s175 = smul.addr %s174, 8
        %s176 = scalar_lea.vmem [#allocation5], %s175
        // Predicated region
        $region29: #{tpu_custom_call.1} parent=23 // pred_check
          %p177 = pneg %p78
        $region30: #{tpu_custom_call.1} parent=23 // pred_check_branch
          %179 = sbr.rel (%p177) target = $region32
        $region31: #{tpu_custom_call.1} parent=23 // pred_region
          %s181 = ssub.s32 128, 128
          %182 = vsyncadd %s173, %s181
          %s183 = smul.addr %s22, 4
          %s184 = sadd.s32 %s23, %s183
          %s185 = smul.addr %s184, 32
          %s186 = scalar_lea.hbm %s1, %s185
          %s187 = sshll.u32 %s176, 4
          %s188 = int_to_ptr.vmem [resolvable:$true] %s187
          %193 = dma.vmem_to_hbm [thread:$0]  %s188, 128, %s186, %s173, 32, 32, 2
        $region32: #{tpu_custom_call.1} parent=23 // pred_fallthru
          _
      $region24: #{tpu_custom_call.1} parent=5 // pred_fallthru
        _
      %p194 = scmp.le.s32.totalorder 2, %s13
      // Predicated region
      $region33: #{tpu_custom_call.1} parent=5 // pred_check
        %p195 = pneg %p194
      $region34: #{tpu_custom_call.1} parent=5 // pred_check_branch
        %197 = sbr.rel (%p195) target = $region36
      $region35: #{tpu_custom_call.1} parent=5 // pred_region
        %s198 = ssub.s32 %s13, 2
        // Predicated region
        $region37: #{tpu_custom_call.1} parent=35 // pred_check
          %p199 = pneg %p84
        $region38: #{tpu_custom_call.1} parent=35 // pred_check_branch
          %201 = sbr.rel (%p199) target = $region40
        $region39: #{tpu_custom_call.1} parent=35 // pred_region
          %s202 = sand.u32 %s69, 1
          %s203 = scalar_lea.sflag [#allocation4], %s202
          %s204 = sand.u32 %s69, 1
          %s205 = smul.addr %s204, 8
          %s206 = scalar_lea.vmem [#allocation5], %s205
          %207 = dma.done %s203, 128
        $region40: #{tpu_custom_call.1} parent=35 // pred_fallthru
          _
      $region36: #{tpu_custom_call.1} parent=5 // pred_fallthru
        _
    $region6: #{tpu_custom_call.1} parent=1 // loop_footer
      %s17 = sadd.s32 1, %s13
    $region7: #{tpu_custom_call.1} parent=1 // loop_footer_branch
      %12 = sbr.rel target = $region3
    $region8: #{tpu_custom_call.1} parent=1 // loop_exit
      _
    %208 = vsyncpa [#allocation3], 1
    %s209 = scalar_lea.sflag [#allocation3], 1
    %210 = vsyncpa %s209, 1
    %211 = vsyncpa [#allocation4], 1
    %s212 = scalar_lea.sflag [#allocation4], 1
    %213 = vsyncpa %s212, 1

</llo_original>
